<compile_context>
chip_gen: v7x
topology: tpu7x:2x2x1
jax: 0.10.0
libtpu: 0.0.40
codegen_flags: <defaults>
</compile_context>

<pallas_src>
import functools

import jax
import jax.numpy as jnp
from jax.experimental import pallas as pl
from jax.experimental.pallas import tpu as pltpu

_LANE = 128
_SUBLANE = 8
_TB_CAP_ROWS = 8192                 # 8192 rows x 128 padded lanes x 4B = 4 MiB/x-buffer
_VMEM_CEIL = 50 * 1024 * 1024       # stay well under v7x's 64 MiB physical VMEM


def _round_up(a, m):
    return (a + m - 1) // m * m


def _fm_kernel(x_ref, vw_ref, v2s_ref, b_ref, o_ref, *, k):
    """FM forward on one (TB, n) batch tile.

    x_ref  : (TB, n)    f32 input tile (streamed / double-buffered)
    vw_ref : (n, k+1)   f32, cols [0, k) = v, col k = linear weight (VMEM-resident)
    v2s_ref: (n, 1)     f32, rowwise sum of v*v (VMEM-resident)
    b_ref  : (1,)       f32 bias scalar in SMEM
    o_ref  : (1, TB)    f32 lane-dense output row
    """
    x = x_ref[...]
    vw = vw_ref[...]
    v2s = v2s_ref[...]
    bias = b_ref[0]

    # One MXU dot yields both x@v (interaction projection) and x@W^T (linear).
    p = jnp.dot(x, vw, preferred_element_type=jnp.float32)            # (TB, k+1)
    xv = p[:, :k]                                                      # (TB, k)
    linear = p[:, k:k + 1]                                             # (TB, 1)

    # Only the row-sum of (x^2) @ (v^2) is needed:
    #   sum_f [(x^2)@(v^2)]_{:,f} = (x^2) @ sum_f (v^2)_{:,f} = (x^2) @ v2s
    p2_sum = jnp.dot(x * x, v2s, preferred_element_type=jnp.float32)   # (TB, 1)
    inter = 0.5 * (jnp.sum(xv * xv, axis=1, keepdims=True) - p2_sum)   # (TB, 1)

    out = jax.nn.sigmoid(linear + inter + bias)                        # (TB, 1)
    # Lane-dense store: XLU transpose to (1, TB) keeps output stores unmasked
    # full-lane vst (XLU slot is otherwise idle here).
    o_ref[...] = out.T.astype(o_ref.dtype)


def _pick_batch_tile(B_pad):
    """Largest 128-aligned divisor of B_pad, capped at _TB_CAP_ROWS, preferring
    >= 4 grid steps (v7x dual-TC sharding + DMA/compute overlap), then >= 2."""
    m = B_pad // _LANE
    for min_grid in (4, 2, 1):
        cap = min(_TB_CAP_ROWS // _LANE, m // min_grid)
        if cap < 1:
            continue
        for d in range(cap, 0, -1):
            if m % d == 0:
                return _LANE * d
    return _LANE


def fm_layer(x, v, w, b, *, batch_tile=None):
    """FMLayer forward. x: (B, n); v: (n, k); w: (n, 1); b: (1, 1) -> (B, 1)."""
    B, n = x.shape
    n_v, k = v.shape
    assert n_v == n and w.shape == (n, 1)

    # Pad the batch to a multiple of 128 so every tile is lane-dense/unmasked
    # and a large irregular B never becomes one giant VMEM-busting block.
    B_pad = max(_LANE, _round_up(B, _LANE))
    x_in = x.astype(jnp.float32)          # no-op for f32 inputs; DMA stays f32
    if B_pad != B:
        x_in = jnp.pad(x_in, ((0, B_pad - B), (0, 0)))

    if (batch_tile is not None and batch_tile % _LANE == 0
            and 0 < batch_tile <= B_pad and B_pad % batch_tile == 0):
        TB = batch_tile
    else:
        TB = _pick_batch_tile(B_pad)
    grid = (B_pad // TB,)

    # Batch-invariant precomputation (tiny), hoisted out of the per-tile kernel.
    vw = jnp.concatenate([v, w], axis=1).astype(jnp.float32)            # (n, k+1)
    v2s = jnp.sum(v.astype(jnp.float32) ** 2, axis=1, keepdims=True)    # (n, 1)
    b_smem = jnp.asarray(b, jnp.float32).reshape(1)                     # SMEM scalar

    # VMEM budget from PADDED shapes (last dim -> 128 lanes, 2nd-last -> 8 sublanes).
    n_l = _round_up(n, _LANE)
    kp_l = _round_up(k + 1, _LANE)
    n_s = _round_up(n, _SUBLANE)
    est = (
        2 * TB * n_l * 4                 # double-buffered x tiles (padded lanes)
        + 2 * _SUBLANE * TB * 4          # double-buffered (1, TB) output rows
        + n_s * (kp_l + _LANE) * 4       # resident vw + v2s (padded)
        + TB * n_l * 4                   # x*x temp
        + 2 * TB * kp_l * 4              # p and xv*xv temps
        + 4 * TB * _LANE * 4             # (TB, 1)-shaped f32 temps (lane-padded)
    )
    vmem_limit = int(min(max(est + est // 4, 16 * 1024 * 1024), _VMEM_CEIL))

    out_row = pl.pallas_call(
        functools.partial(_fm_kernel, k=k),
        out_shape=jax.ShapeDtypeStruct((1, B_pad), jnp.float32),
        grid=grid,
        in_specs=[
            pl.BlockSpec((TB, n), lambda i: (i, 0)),                # x: streamed over batch
            pl.BlockSpec((n, k + 1), lambda i: (0, 0)),             # vw: VMEM-resident
            pl.BlockSpec((n, 1), lambda i: (0, 0)),                 # sum(v*v, axis=1): resident
            pl.BlockSpec(memory_space=pltpu.MemorySpace.SMEM),      # bias scalar
        ],
        out_specs=pl.BlockSpec((1, TB), lambda i: (0, i)),          # lane-dense output row
        compiler_params=pltpu.CompilerParams(
            dimension_semantics=("parallel",),
            vmem_limit_bytes=vmem_limit,
        ),
    )(x_in, vw, v2s, b_smem)

    return out_row.reshape(B_pad, 1)[:B]


def fm_reference(x, v, w, b):
    linear_part = x @ w + b[0, 0]
    p1 = (x @ v) ** 2
    p2 = (x ** 2) @ (v ** 2)
    inter = 0.5 * jnp.sum(p1 - p2, axis=1, keepdims=True)
    return jax.nn.sigmoid(linear_part + inter)


if __name__ == "__main__":
    keys = jax.random.split(jax.random.PRNGKey(0), 8)

    # --- Small case: FMLayer(n=10, k=5), batch=8 (matches the module defaults) ---
    n, k, batch = 10, 5, 8
    x = jax.random.normal(keys[0], (batch, n), dtype=jnp.float32)
    bound = 1.0 / (n ** 0.5)
    w = jax.random.uniform(keys[1], (n, 1), minval=-bound, maxval=bound,
                           dtype=jnp.float32)        # linear weight stored as (n, 1)
    b = jax.random.uniform(keys[2], (1, 1), minval=-bound, maxval=bound,
                           dtype=jnp.float32)
    v = jax.random.uniform(keys[3], (n, k), minval=-0.1, maxval=0.1,
                           dtype=jnp.float32)

    out = jax.block_until_ready(fm_layer(x, v, w, b))
    ref = fm_reference(x, v, w, b)
    assert out.shape == (batch, 1)
    assert jnp.allclose(out, ref, atol=1e-5, rtol=1e-5)

    # --- Non-128-aligned batch exercising padding + the multi-step grid path ---
    B2, n2, k2 = 1000, 10, 5
    xb = jax.random.normal(keys[4], (B2, n2), dtype=jnp.float32)
    bound2 = 1.0 / (n2 ** 0.5)
    wb = jax.random.uniform(keys[5], (n2, 1), minval=-bound2, maxval=bound2,
                            dtype=jnp.float32)
    bb = jax.random.uniform(keys[6], (1, 1), minval=-bound2, maxval=bound2,
                            dtype=jnp.float32)
    vb = jax.random.uniform(keys[7], (n2, k2), minval=-0.1, maxval=0.1,
                            dtype=jnp.float32)

    out2 = jax.block_until_ready(fm_layer(xb, vb, wb, bb))
    ref2 = fm_reference(xb, vb, wb, bb)
    assert out2.shape == (B2, 1)
    assert jnp.allclose(out2, ref2, atol=1e-5, rtol=1e-5)

    print("KERNEL_OK")
</pallas_src>

<mosaic_0001>
module attributes {stable_mosaic.version = 11 : i64} {
  func.func @_fm_kernel(%arg0: i32, %arg1: memref<128x10xf32, #tpu.memory_space<vmem>>, %arg2: memref<10x6xf32, #tpu.memory_space<vmem>>, %arg3: memref<10x1xf32, #tpu.memory_space<vmem>>, %arg4: memref<1xf32, #tpu.memory_space<smem>>, %arg5: memref<1x128xf32, #tpu.memory_space<vmem>>) attributes {dimension_semantics = [#tpu.dimension_semantics<parallel>], iteration_bounds = array<i64: 1>, scalar_prefetch = 0 : i64, scratch_operands = 0 : i64, tpu.core_type = #tpu.core_type<tc>, window_params = [{transform_indices = @transform_0, window_bounds = array<i64: 128, 10>}, {pipeline_mode = #tpu.pipeline_mode<synchronous>, transform_indices = @transform_1, window_bounds = array<i64: 10, 6>}, {pipeline_mode = #tpu.pipeline_mode<synchronous>, transform_indices = @transform_2, window_bounds = array<i64: 10, 1>}, {transform_indices = @transform_3, window_bounds = array<i64: 1>}, {transform_indices = @transform_4, window_bounds = array<i64: 1, 128>}]} {
    %c0 = arith.constant 0 : index
    %c0_0 = arith.constant 0 : index
    %0 = vector.load %arg1[%c0, %c0_0] : memref<128x10xf32, #tpu.memory_space<vmem>>, vector<128x10xf32>
    %c0_1 = arith.constant 0 : index
    %c0_2 = arith.constant 0 : index
    %1 = vector.load %arg2[%c0_1, %c0_2] : memref<10x6xf32, #tpu.memory_space<vmem>>, vector<10x6xf32>
    %c0_3 = arith.constant 0 : index
    %c0_4 = arith.constant 0 : index
    %2 = vector.load %arg3[%c0_3, %c0_4] : memref<10x1xf32, #tpu.memory_space<vmem>>, vector<10x1xf32>
    %c0_5 = arith.constant 0 : index
    %3 = memref.load %arg4[%c0_5] : memref<1xf32, #tpu.memory_space<smem>>
    %cst = arith.constant dense<0.000000e+00> : vector<128x6xf32>
    %4 = tpu.matmul %0, %1, %cst {dimension_numbers = #tpu.dot_dimension_numbers<[1], [0], [0], [1], [0, 0, 1, 1], [], []>} : vector<128x10xf32>, vector<10x6xf32>, vector<128x6xf32> -> vector<128x6xf32>
    %5 = vector.extract_strided_slice %4 {offsets = [0, 0], sizes = [128, 5], strides = [1, 1]} : vector<128x6xf32> to vector<128x5xf32>
    %6 = vector.extract_strided_slice %4 {offsets = [0, 5], sizes = [128, 1], strides = [1, 1]} : vector<128x6xf32> to vector<128x1xf32>
    %7 = arith.mulf %0, %0 : vector<128x10xf32>
    %cst_6 = arith.constant dense<0.000000e+00> : vector<128x1xf32>
    %8 = tpu.matmul %7, %2, %cst_6 {dimension_numbers = #tpu.dot_dimension_numbers<[1], [0], [0], [1], [0, 0, 1, 1], [], []>} : vector<128x10xf32>, vector<10x1xf32>, vector<128x1xf32> -> vector<128x1xf32>
    %9 = arith.mulf %5, %5 : vector<128x5xf32>
    %cst_7 = arith.constant dense<0.000000e+00> : vector<128xf32>
    %10 = vector.multi_reduction <add>, %9, %cst_7 [1] : vector<128x5xf32> to vector<128xf32>
    %11 = vector.shape_cast %10 : vector<128xf32> to vector<128x1xf32>
    %12 = arith.subf %11, %8 : vector<128x1xf32>
    %cst_8 = arith.constant 5.000000e-01 : f32
    %13 = vector.broadcast %cst_8 : f32 to vector<128x1xf32>
    %14 = arith.mulf %13, %12 : vector<128x1xf32>
    %15 = arith.addf %6, %14 : vector<128x1xf32>
    %16 = vector.broadcast %3 : f32 to vector<128x1xf32>
    %17 = arith.addf %15, %16 : vector<128x1xf32>
    %18 = arith.negf %17 : vector<128x1xf32>
    %19 = math.exp %18 : vector<128x1xf32>
    %cst_9 = arith.constant 1.000000e+00 : f32
    %20 = vector.broadcast %cst_9 : f32 to vector<128x1xf32>
    %21 = arith.addf %20, %19 : vector<128x1xf32>
    %22 = arith.divf %20, %21 : vector<128x1xf32>
    %23 = tpu.transpose %22, [1, 0] : vector<128x1xf32> -> vector<1x128xf32>
    %c0_10 = arith.constant 0 : index
    %c0_11 = arith.constant 0 : index
    %24 = vector.load %arg5[%c0_10, %c0_11] : memref<1x128xf32, #tpu.memory_space<vmem>>, vector<1x128xf32>
    tpu.vector_store %arg5[%c0_10, %c0_11], %23 {strides = array<i32>} : memref<1x128xf32, #tpu.memory_space<vmem>>, vector<1x128xf32>,
    return
  }
  func.func @transform_0(%arg0: i32) -> (i32, i32) {
    %c0_i32 = arith.constant 0 : i32
    %c0_i32_0 = arith.constant 0 : i32
    return %arg0, %c0_i32 : i32, i32
  }
  func.func @transform_1(%arg0: i32) -> (i32, i32) {
    %c0_i32 = arith.constant 0 : i32
    %c0_i32_0 = arith.constant 0 : i32
    %c0_i32_1 = arith.constant 0 : i32
    return %c0_i32, %c0_i32_0 : i32, i32
  }
  func.func @transform_2(%arg0: i32) -> (i32, i32) {
    %c0_i32 = arith.constant 0 : i32
    %c0_i32_0 = arith.constant 0 : i32
    %c0_i32_1 = arith.constant 0 : i32
    return %c0_i32, %c0_i32_0 : i32, i32
  }
  func.func @transform_3(%arg0: i32) -> i32 {
    %c0_i32 = arith.constant 0 : i32
    %c0_i32_0 = arith.constant 0 : i32
    return %c0_i32 : i32
  }
  func.func @transform_4(%arg0: i32) -> (i32, i32) {
    %c0_i32 = arith.constant 0 : i32
    %c0_i32_0 = arith.constant 0 : i32
    return %c0_i32, %arg0 : i32, i32
  }
}

</mosaic_0001>

<llo_original>
// kernel: tpu_custom_call.1
$region0: #{tpu_custom_call.1}
  #allocation0 [shape = 'u32[]', space=smem, size = 0x4, offset = 0x4, fixed_abs, tag = 'smem constant byte address 0x4 - core index']
  #allocation1 [shape = 'u32[144,128]{1,0:T(1,128)}', space=vmem, size = 0x12000, scoped, tag = 'internal scratch']
  #allocation2 [shape = 'f32[1]{0:T(128)S(6)}', space=smem, size = 0x200, scoped, tag = 'scoped memory for tpu_custom_call.1']
  %s0 = inlined_call_operand.vmem [shape: f32[128,10], index: 0, kind: input, shape index: {}]
  %s1 = inlined_call_operand.vmem [shape: f32[10,6], index: 1, kind: input, shape index: {}]
  %s2 = inlined_call_operand.vmem [shape: f32[10,1], index: 2, kind: input, shape index: {}]
  %s3 = inlined_call_operand.<no memory space> [shape: f32[1], index: 3, kind: input, shape index: {}]
  %s4 = inlined_call_operand.hbm [shape: f32[1,128], index: 4, kind: output, shape index: {}]
  %s5 = sld [smem:[#allocation0]]
  $region26: #{tpu_custom_call.1} parent=0
    _
  %s7 = ssub.s32 1, %s5
  %s8 = scalar_select 0, %s7, %s5
  %9 = sst [smem:[#allocation2]] %s3
  $region1: #{tpu_custom_call.1} parent=0
    #allocation3 [shape = 'u8[512]{0}', space=vmem, size = 0x400, scoped, tag = 'output window, operand 0, single buffered']
    #allocation4 [shape = 's32[1]{0}', space=sflag, size = 0x4, scoped, tag = 'scoped memory for tpu_custom_call.1']
    %10 = vsyncpa [#allocation4], 0
    // Predicated region
    $region2: #{tpu_custom_call.1} parent=1 // pred_check
      _
    $region3: #{tpu_custom_call.1} parent=1 // pred_check_branch
      %12 = sbr.rel (0) target = $region5
    $region4: #{tpu_custom_call.1} parent=1 // pred_region
      _
    $region5: #{tpu_custom_call.1} parent=1 // pred_fallthru
      _
    // Predicated region
    $region6: #{tpu_custom_call.1} parent=1 // pred_check
      _
    $region7: #{tpu_custom_call.1} parent=1 // pred_check_branch
      %14 = sbr.rel (0) target = $region9
    $region8: #{tpu_custom_call.1} parent=1 // pred_region
      _
    $region9: #{tpu_custom_call.1} parent=1 // pred_fallthru
      _
    // Predicated region
    $region10: #{tpu_custom_call.1} parent=1 // pred_check
      _
    $region11: #{tpu_custom_call.1} parent=1 // pred_check_branch
      %16 = sbr.rel (0) target = $region13
    $region12: #{tpu_custom_call.1} parent=1 // pred_region
      _
    $region13: #{tpu_custom_call.1} parent=1 // pred_fallthru
      _
    // Predicated region
    $region14: #{tpu_custom_call.1} parent=1 // pred_check
      _
    $region15: #{tpu_custom_call.1} parent=1 // pred_check_branch
      %18 = sbr.rel (0) target = $region17
    $region16: #{tpu_custom_call.1} parent=1 // pred_region
      _
    $region17: #{tpu_custom_call.1} parent=1 // pred_fallthru
      _
    %v19 = vld [vmem:[%s0] sm:$0xff]
    %v20 = vld [vmem:[%s0 + $0x8] sm:$0xff]
    %v21 = vld [vmem:[%s0 + $0x10] sm:$0xff]
    %v22 = vld [vmem:[%s0 + $0x18] sm:$0xff]
    %v23 = vld [vmem:[%s0 + $0x20] sm:$0xff]
    %v24 = vld [vmem:[%s0 + $0x28] sm:$0xff]
    %v25 = vld [vmem:[%s0 + $0x30] sm:$0xff]
    %v26 = vld [vmem:[%s0 + $0x38] sm:$0xff]
    %v27 = vld [vmem:[%s0 + $0x40] sm:$0xff]
    %v28 = vld [vmem:[%s0 + $0x48] sm:$0xff]
    %v29 = vld [vmem:[%s0 + $0x50] sm:$0xff]
    %v30 = vld [vmem:[%s0 + $0x58] sm:$0xff]
    %v31 = vld [vmem:[%s0 + $0x60] sm:$0xff]
    %v32 = vld [vmem:[%s0 + $0x68] sm:$0xff]
    %v33 = vld [vmem:[%s0 + $0x70] sm:$0xff]
    %v34 = vld [vmem:[%s0 + $0x78] sm:$0xff]
    %v35 = vld [vmem:[%s1] sm:$0xff]
    %v36 = vld [vmem:[%s1 + $0x8] sm:$0x3]
    %v37 = vld [vmem:[%s2] sm:$0xff]
    %v38 = vld [vmem:[%s2 + $0x8] sm:$0x3]
    %s39 = sld [smem:[#allocation2]]
    %vm40 = vcmask 80896
    %v42 = vsel %vm40, %v19, 0
    %v45 = vsel %vm40, %v20, 0
    %v48 = vsel %vm40, %v21, 0
    %v51 = vsel %vm40, %v22, 0
    %v54 = vsel %vm40, %v23, 0
    %v57 = vsel %vm40, %v24, 0
    %v60 = vsel %vm40, %v25, 0
    %v63 = vsel %vm40, %v26, 0
    %v66 = vsel %vm40, %v27, 0
    %v69 = vsel %vm40, %v28, 0
    %v72 = vsel %vm40, %v29, 0
    %v75 = vsel %vm40, %v30, 0
    %v78 = vsel %vm40, %v31, 0
    %v81 = vsel %vm40, %v32, 0
    %v84 = vsel %vm40, %v33, 0
    %v87 = vsel %vm40, %v34, 0
    %vm89 = vcmask 1041408
    %v91 = vsel %vm89, %v36, 0
    %93 = vmatprep.subr.mxu0 0.0
    %94 = vmatpush1.msra.mxu0 %v35
    %95 = vmatprep.subr.mxu0 0.0
    %96 = vmatpush1.msra.mxu0 %v91
    %97 = vmatprep.subr.mxu0 0.0
    %98 = vmatpush1.msra.mxu0 0.0
    %99 = vmatprep.subr.mxu0 0.0
    %100 = vmatpush1.msra.mxu0 0.0
    %101 = vmatprep.subr.mxu0 0.0
    %102 = vmatpush1.msra.mxu0 0.0
    %103 = vmatprep.subr.mxu0 0.0
    %104 = vmatpush1.msra.mxu0 0.0
    %105 = vmatprep.subr.mxu0 0.0
    %106 = vmatpush1.msra.mxu0 0.0
    %107 = vmatprep.subr.mxu0 0.0
    %108 = vmatpush1.msra.mxu0 0.0
    %109 = vmatprep.subr.mxu0 0.0
    %110 = vmatpush1.msra.mxu0 0.0
    %111 = vmatprep.subr.mxu0 0.0
    %112 = vmatpush1.msra.mxu0 0.0
    %113 = vmatprep.subr.mxu0 0.0
    %114 = vmatpush1.msra.mxu0 0.0
    %115 = vmatprep.subr.mxu0 0.0
    %116 = vmatpush1.msra.mxu0 0.0
    %117 = vmatprep.subr.mxu0 0.0
    %118 = vmatpush1.msra.mxu0 0.0
    %119 = vmatprep.subr.mxu0 0.0
    %120 = vmatpush1.msra.mxu0 0.0
    %121 = vmatprep.subr.mxu0 0.0
    %122 = vmatpush1.msra.mxu0 0.0
    %123 = vmatprep.subr.mxu0 0.0
    %124 = vmatpush1.msra.mxu0 0.0
    %125 = vmatprep.subr.mxu0 0.0
    %126 = vmatpush1.msra.mxu0 0.0
    %127 = vmatprep.subr.mxu0 0.0
    %128 = vmatpush1.msra.mxu0 0.0
    %129 = vmatprep.subr.mxu0 0.0
    %130 = vmatpush1.msra.mxu0 0.0
    %131 = vmatprep.subr.mxu0 0.0
    %132 = vmatpush1.msra.mxu0 0.0
    %133 = vmatprep.subr.mxu0 0.0
    %134 = vmatpush1.msra.mxu0 0.0
    %135 = vmatprep.subr.mxu0 0.0
    %136 = vmatpush1.msra.mxu0 0.0
    %137 = vmatprep.subr.mxu0 0.0
    %138 = vmatpush1.msra.mxu0 0.0
    %139 = vmatprep.subr.mxu0 0.0
    %140 = vmatpush1.msra.mxu0 0.0
    %141 = vmatprep.subr.mxu0 0.0
    %142 = vmatpush1.msra.mxu0 0.0
    %143 = vmatprep.subr.mxu0 0.0
    %144 = vmatpush1.msra.mxu0 0.0
    %145 = vmatprep.subr.mxu0 0.0
    %146 = vmatpush1.msra.mxu0 0.0
    %147 = vmatprep.subr.mxu0 0.0
    %148 = vmatpush1.msra.mxu0 0.0
    %149 = vmatprep.subr.mxu0 0.0
    %150 = vmatpush1.msra.mxu0 0.0
    %151 = vmatprep.subr.mxu0 0.0
    %152 = vmatpush1.msra.mxu0 0.0
    %153 = vmatprep.subr.mxu0 0.0
    %154 = vmatpush1.msra.mxu0 0.0
    %155 = vmatprep.subr.mxu0 0.0
    %156 = vmatpush1.msra.mxu0 0.0
    %157 = vmatprep.mubr.f32.mxu0 0.0
    %158 = vmatmul.mubr.f32.gmra.mrb[0].mxu0 %v42
    %v159 = vpop.f32.mrb[0].mxu0
    %v160 = vadd.f32 0.0, %v159
    %v161 = vpop.f32.mrb[0].mxu0
    %162 = vmatprep.mubr.f32.mxu0 0.0
    %163 = vmatmul.mubr.f32.gmra.mrb[0].mxu0 %v45
    %v164 = vpop.f32.mrb[0].mxu0
    %v165 = vadd.f32 0.0, %v164
    %v166 = vpop.f32.mrb[0].mxu0
    %167 = vmatprep.mubr.f32.mxu0 0.0
    %168 = vmatmul.mubr.f32.gmra.mrb[0].mxu0 %v48
    %v169 = vpop.f32.mrb[0].mxu0
    %v170 = vadd.f32 0.0, %v169
    %v171 = vpop.f32.mrb[0].mxu0
    %172 = vmatprep.mubr.f32.mxu0 0.0
    %173 = vmatmul.mubr.f32.gmra.mrb[0].mxu0 %v51
    %v174 = vpop.f32.mrb[0].mxu0
    %v175 = vadd.f32 0.0, %v174
    %v176 = vpop.f32.mrb[0].mxu0
    %177 = vmatprep.mubr.f32.mxu0 0.0
    %178 = vmatmul.mubr.f32.gmra.mrb[0].mxu0 %v54
    %v179 = vpop.f32.mrb[0].mxu0
    %v180 = vadd.f32 0.0, %v179
    %v181 = vpop.f32.mrb[0].mxu0
    %182 = vmatprep.mubr.f32.mxu0 0.0
    %183 = vmatmul.mubr.f32.gmra.mrb[0].mxu0 %v57
    %v184 = vpop.f32.mrb[0].mxu0
    %v185 = vadd.f32 0.0, %v184
    %v186 = vpop.f32.mrb[0].mxu0
    %187 = vmatprep.mubr.f32.mxu0 0.0
    %188 = vmatmul.mubr.f32.gmra.mrb[0].mxu0 %v60
    %v189 = vpop.f32.mrb[0].mxu0
    %v190 = vadd.f32 0.0, %v189
    %v191 = vpop.f32.mrb[0].mxu0
    %192 = vmatprep.mubr.f32.mxu0 0.0
    %193 = vmatmul.mubr.f32.gmra.mrb[0].mxu0 %v63
    %v194 = vpop.f32.mrb[0].mxu0
    %v195 = vadd.f32 0.0, %v194
    %v196 = vpop.f32.mrb[0].mxu0
    %197 = vmatprep.mubr.f32.mxu0 0.0
    %198 = vmatmul.mubr.f32.gmra.mrb[0].mxu0 %v66
    %v199 = vpop.f32.mrb[0].mxu0
    %v200 = vadd.f32 0.0, %v199
    %v201 = vpop.f32.mrb[0].mxu0
    %202 = vmatprep.mubr.f32.mxu0 0.0
    %203 = vmatmul.mubr.f32.gmra.mrb[0].mxu0 %v69
    %v204 = vpop.f32.mrb[0].mxu0
    %v205 = vadd.f32 0.0, %v204
    %v206 = vpop.f32.mrb[0].mxu0
    %207 = vmatprep.mubr.f32.mxu0 0.0
    %208 = vmatmul.mubr.f32.gmra.mrb[0].mxu0 %v72
    %v209 = vpop.f32.mrb[0].mxu0
    %v210 = vadd.f32 0.0, %v209
    %v211 = vpop.f32.mrb[0].mxu0
    %212 = vmatprep.mubr.f32.mxu0 0.0
    %213 = vmatmul.mubr.f32.gmra.mrb[0].mxu0 %v75
    %v214 = vpop.f32.mrb[0].mxu0
    %v215 = vadd.f32 0.0, %v214
    %v216 = vpop.f32.mrb[0].mxu0
    %217 = vmatprep.mubr.f32.mxu0 0.0
    %218 = vmatmul.mubr.f32.gmra.mrb[0].mxu0 %v78
    %v219 = vpop.f32.mrb[0].mxu0
    %v220 = vadd.f32 0.0, %v219
    %v221 = vpop.f32.mrb[0].mxu0
    %222 = vmatprep.mubr.f32.mxu0 0.0
    %223 = vmatmul.mubr.f32.gmra.mrb[0].mxu0 %v81
    %v224 = vpop.f32.mrb[0].mxu0
    %v225 = vadd.f32 0.0, %v224
    %v226 = vpop.f32.mrb[0].mxu0
    %227 = vmatprep.mubr.f32.mxu0 0.0
    %228 = vmatmul.mubr.f32.gmra.mrb[0].mxu0 %v84
    %v229 = vpop.f32.mrb[0].mxu0
    %v230 = vadd.f32 0.0, %v229
    %v231 = vpop.f32.mrb[0].mxu0
    %232 = vmatprep.mubr.f32.mxu0 0.0
    %233 = vmatmul.mubr.f32.gmra.mrb[0].mxu0 %v87
    %v234 = vpop.f32.mrb[0].mxu0
    %v235 = vadd.f32 0.0, %v234
    %v236 = vpop.f32.mrb[0].mxu0
    %237 = vdwg.mxu0
    %v238 = vmul.f32 %v19, %v19
    %v239 = vmul.f32 %v20, %v20
    %v240 = vmul.f32 %v21, %v21
    %v241 = vmul.f32 %v22, %v22
    %v242 = vmul.f32 %v23, %v23
    %v243 = vmul.f32 %v24, %v24
    %v244 = vmul.f32 %v25, %v25
    %v245 = vmul.f32 %v26, %v26
    %v246 = vmul.f32 %v27, %v27
    %v247 = vmul.f32 %v28, %v28
    %v248 = vmul.f32 %v29, %v29
    %v249 = vmul.f32 %v30, %v30
    %v250 = vmul.f32 %v31, %v31
    %v251 = vmul.f32 %v32, %v32
    %v252 = vmul.f32 %v33, %v33
    %v253 = vmul.f32 %v34, %v34
    %v255 = vsel %vm40, %v238, 0
    %v258 = vsel %vm40, %v239, 0
    %v261 = vsel %vm40, %v240, 0
    %v264 = vsel %vm40, %v241, 0
    %v267 = vsel %vm40, %v242, 0
    %v270 = vsel %vm40, %v243, 0
    %v273 = vsel %vm40, %v244, 0
    %v276 = vsel %vm40, %v245, 0
    %v279 = vsel %vm40, %v246, 0
    %v282 = vsel %vm40, %v247, 0
    %v285 = vsel %vm40, %v248, 0
    %v288 = vsel %vm40, %v249, 0
    %v291 = vsel %vm40, %v250, 0
    %v294 = vsel %vm40, %v251, 0
    %v297 = vsel %vm40, %v252, 0
    %v300 = vsel %vm40, %v253, 0
    %v303 = vsel %vm89, %v38, 0
    %305 = vmatprep.subr.mxu0 0.0
    %306 = vmatpush1.msra.mxu0 %v37
    %307 = vmatprep.subr.mxu0 0.0
    %308 = vmatpush1.msra.mxu0 %v303
    %309 = vmatprep.subr.mxu0 0.0
    %310 = vmatpush1.msra.mxu0 0.0
    %311 = vmatprep.subr.mxu0 0.0
    %312 = vmatpush1.msra.mxu0 0.0
    %313 = vmatprep.subr.mxu0 0.0
    %314 = vmatpush1.msra.mxu0 0.0
    %315 = vmatprep.subr.mxu0 0.0
    %316 = vmatpush1.msra.mxu0 0.0
    %317 = vmatprep.subr.mxu0 0.0
    %318 = vmatpush1.msra.mxu0 0.0
    %319 = vmatprep.subr.mxu0 0.0
    %320 = vmatpush1.msra.mxu0 0.0
    %321 = vmatprep.subr.mxu0 0.0
    %322 = vmatpush1.msra.mxu0 0.0
    %323 = vmatprep.subr.mxu0 0.0
    %324 = vmatpush1.msra.mxu0 0.0
    %325 = vmatprep.subr.mxu0 0.0
    %326 = vmatpush1.msra.mxu0 0.0
    %327 = vmatprep.subr.mxu0 0.0
    %328 = vmatpush1.msra.mxu0 0.0
    %329 = vmatprep.subr.mxu0 0.0
    %330 = vmatpush1.msra.mxu0 0.0
    %331 = vmatprep.subr.mxu0 0.0
    %332 = vmatpush1.msra.mxu0 0.0
    %333 = vmatprep.subr.mxu0 0.0
    %334 = vmatpush1.msra.mxu0 0.0
    %335 = vmatprep.subr.mxu0 0.0
    %336 = vmatpush1.msra.mxu0 0.0
    %337 = vmatprep.subr.mxu0 0.0
    %338 = vmatpush1.msra.mxu0 0.0
    %339 = vmatprep.subr.mxu0 0.0
    %340 = vmatpush1.msra.mxu0 0.0
    %341 = vmatprep.subr.mxu0 0.0
    %342 = vmatpush1.msra.mxu0 0.0
    %343 = vmatprep.subr.mxu0 0.0
    %344 = vmatpush1.msra.mxu0 0.0
    %345 = vmatprep.subr.mxu0 0.0
    %346 = vmatpush1.msra.mxu0 0.0
    %347 = vmatprep.subr.mxu0 0.0
    %348 = vmatpush1.msra.mxu0 0.0
    %349 = vmatprep.subr.mxu0 0.0
    %350 = vmatpush1.msra.mxu0 0.0
    %351 = vmatprep.subr.mxu0 0.0
    %352 = vmatpush1.msra.mxu0 0.0
    %353 = vmatprep.subr.mxu0 0.0
    %354 = vmatpush1.msra.mxu0 0.0
    %355 = vmatprep.subr.mxu0 0.0
    %356 = vmatpush1.msra.mxu0 0.0
    %357 = vmatprep.subr.mxu0 0.0
    %358 = vmatpush1.msra.mxu0 0.0
    %359 = vmatprep.subr.mxu0 0.0
    %360 = vmatpush1.msra.mxu0 0.0
    %361 = vmatprep.subr.mxu0 0.0
    %362 = vmatpush1.msra.mxu0 0.0
    %363 = vmatprep.subr.mxu0 0.0
    %364 = vmatpush1.msra.mxu0 0.0
    %365 = vmatprep.subr.mxu0 0.0
    %366 = vmatpush1.msra.mxu0 0.0
    %367 = vmatprep.subr.mxu0 0.0
    %368 = vmatpush1.msra.mxu0 0.0
    %369 = vmatprep.mubr.f32.mxu0 0.0
    %370 = vmatmul.mubr.f32.gmra.mrb[0].mxu0 %v255
    %v371 = vpop.f32.mrb[0].mxu0
    %v372 = vadd.f32 0.0, %v371
    %v373 = vpop.f32.mrb[0].mxu0
    %374 = vmatprep.mubr.f32.mxu0 0.0
    %375 = vmatmul.mubr.f32.gmra.mrb[0].mxu0 %v258
    %v376 = vpop.f32.mrb[0].mxu0
    %v377 = vadd.f32 0.0, %v376
    %v378 = vpop.f32.mrb[0].mxu0
    %379 = vmatprep.mubr.f32.mxu0 0.0
    %380 = vmatmul.mubr.f32.gmra.mrb[0].mxu0 %v261
    %v381 = vpop.f32.mrb[0].mxu0
    %v382 = vadd.f32 0.0, %v381
    %v383 = vpop.f32.mrb[0].mxu0
    %384 = vmatprep.mubr.f32.mxu0 0.0
    %385 = vmatmul.mubr.f32.gmra.mrb[0].mxu0 %v264
    %v386 = vpop.f32.mrb[0].mxu0
    %v387 = vadd.f32 0.0, %v386
    %v388 = vpop.f32.mrb[0].mxu0
    %389 = vmatprep.mubr.f32.mxu0 0.0
    %390 = vmatmul.mubr.f32.gmra.mrb[0].mxu0 %v267
    %v391 = vpop.f32.mrb[0].mxu0
    %v392 = vadd.f32 0.0, %v391
    %v393 = vpop.f32.mrb[0].mxu0
    %394 = vmatprep.mubr.f32.mxu0 0.0
    %395 = vmatmul.mubr.f32.gmra.mrb[0].mxu0 %v270
    %v396 = vpop.f32.mrb[0].mxu0
    %v397 = vadd.f32 0.0, %v396
    %v398 = vpop.f32.mrb[0].mxu0
    %399 = vmatprep.mubr.f32.mxu0 0.0
    %400 = vmatmul.mubr.f32.gmra.mrb[0].mxu0 %v273
    %v401 = vpop.f32.mrb[0].mxu0
    %v402 = vadd.f32 0.0, %v401
    %v403 = vpop.f32.mrb[0].mxu0
    %404 = vmatprep.mubr.f32.mxu0 0.0
    %405 = vmatmul.mubr.f32.gmra.mrb[0].mxu0 %v276
    %v406 = vpop.f32.mrb[0].mxu0
    %v407 = vadd.f32 0.0, %v406
    %v408 = vpop.f32.mrb[0].mxu0
    %409 = vmatprep.mubr.f32.mxu0 0.0
    %410 = vmatmul.mubr.f32.gmra.mrb[0].mxu0 %v279
    %v411 = vpop.f32.mrb[0].mxu0
    %v412 = vadd.f32 0.0, %v411
    %v413 = vpop.f32.mrb[0].mxu0
    %414 = vmatprep.mubr.f32.mxu0 0.0
    %415 = vmatmul.mubr.f32.gmra.mrb[0].mxu0 %v282
    %v416 = vpop.f32.mrb[0].mxu0
    %v417 = vadd.f32 0.0, %v416
    %v418 = vpop.f32.mrb[0].mxu0
    %419 = vmatprep.mubr.f32.mxu0 0.0
    %420 = vmatmul.mubr.f32.gmra.mrb[0].mxu0 %v285
    %v421 = vpop.f32.mrb[0].mxu0
    %v422 = vadd.f32 0.0, %v421
    %v423 = vpop.f32.mrb[0].mxu0
    %424 = vmatprep.mubr.f32.mxu0 0.0
    %425 = vmatmul.mubr.f32.gmra.mrb[0].mxu0 %v288
    %v426 = vpop.f32.mrb[0].mxu0
    %v427 = vadd.f32 0.0, %v426
    %v428 = vpop.f32.mrb[0].mxu0
    %429 = vmatprep.mubr.f32.mxu0 0.0
    %430 = vmatmul.mubr.f32.gmra.mrb[0].mxu0 %v291
    %v431 = vpop.f32.mrb[0].mxu0
    %v432 = vadd.f32 0.0, %v431
    %v433 = vpop.f32.mrb[0].mxu0
    %434 = vmatprep.mubr.f32.mxu0 0.0
    %435 = vmatmul.mubr.f32.gmra.mrb[0].mxu0 %v294
    %v436 = vpop.f32.mrb[0].mxu0
    %v437 = vadd.f32 0.0, %v436
    %v438 = vpop.f32.mrb[0].mxu0
    %439 = vmatprep.mubr.f32.mxu0 0.0
    %440 = vmatmul.mubr.f32.gmra.mrb[0].mxu0 %v297
    %v441 = vpop.f32.mrb[0].mxu0
    %v442 = vadd.f32 0.0, %v441
    %v443 = vpop.f32.mrb[0].mxu0
    %444 = vmatprep.mubr.f32.mxu0 0.0
    %445 = vmatmul.mubr.f32.gmra.mrb[0].mxu0 %v300
    %v446 = vpop.f32.mrb[0].mxu0
    %v447 = vadd.f32 0.0, %v446
    %v448 = vpop.f32.mrb[0].mxu0
    %449 = vdwg.mxu0
    %v450 = vmul.f32 %v160, %v160
    %v451 = vmul.f32 %v165, %v165
    %v452 = vmul.f32 %v170, %v170
    %v453 = vmul.f32 %v175, %v175
    %v454 = vmul.f32 %v180, %v180
    %v455 = vmul.f32 %v185, %v185
    %v456 = vmul.f32 %v190, %v190
    %v457 = vmul.f32 %v195, %v195
    %v458 = vmul.f32 %v200, %v200
    %v459 = vmul.f32 %v205, %v205
    %v460 = vmul.f32 %v210, %v210
    %v461 = vmul.f32 %v215, %v215
    %v462 = vmul.f32 %v220, %v220
    %v463 = vmul.f32 %v225, %v225
    %v464 = vmul.f32 %v230, %v230
    %v465 = vmul.f32 %v235, %v235
    %vm466 = vcmask 39936
    %v467 = vsel %vm466, %v450, 0.0
    %468 = vadd.xlane.f32.xlu0 %v467
    %v469 = vpop.xlane.xlu0 %468
    %v470 = vsel %vm466, %v451, 0.0
    %471 = vadd.xlane.f32.xlu0 %v470
    %v472 = vpop.xlane.xlu0 %471
    %v473 = vsel %vm466, %v452, 0.0
    %474 = vadd.xlane.f32.xlu0 %v473
    %v475 = vpop.xlane.xlu0 %474
    %v476 = vsel %vm466, %v453, 0.0
    %477 = vadd.xlane.f32.xlu0 %v476
    %v478 = vpop.xlane.xlu0 %477
    %v479 = vsel %vm466, %v454, 0.0
    %480 = vadd.xlane.f32.xlu0 %v479
    %v481 = vpop.xlane.xlu0 %480
    %v482 = vsel %vm466, %v455, 0.0
    %483 = vadd.xlane.f32.xlu0 %v482
    %v484 = vpop.xlane.xlu0 %483
    %v485 = vsel %vm466, %v456, 0.0
    %486 = vadd.xlane.f32.xlu0 %v485
    %v487 = vpop.xlane.xlu0 %486
    %v488 = vsel %vm466, %v457, 0.0
    %489 = vadd.xlane.f32.xlu0 %v488
    %v490 = vpop.xlane.xlu0 %489
    %v491 = vsel %vm466, %v458, 0.0
    %492 = vadd.xlane.f32.xlu0 %v491
    %v493 = vpop.xlane.xlu0 %492
    %v494 = vsel %vm466, %v459, 0.0
    %495 = vadd.xlane.f32.xlu0 %v494
    %v496 = vpop.xlane.xlu0 %495
    %v497 = vsel %vm466, %v460, 0.0
    %498 = vadd.xlane.f32.xlu0 %v497
    %v499 = vpop.xlane.xlu0 %498
    %v500 = vsel %vm466, %v461, 0.0
    %501 = vadd.xlane.f32.xlu0 %v500
    %v502 = vpop.xlane.xlu0 %501
    %v503 = vsel %vm466, %v462, 0.0
    %504 = vadd.xlane.f32.xlu0 %v503
    %v505 = vpop.xlane.xlu0 %504
    %v506 = vsel %vm466, %v463, 0.0
    %507 = vadd.xlane.f32.xlu0 %v506
    %v508 = vpop.xlane.xlu0 %507
    %v509 = vsel %vm466, %v464, 0.0
    %510 = vadd.xlane.f32.xlu0 %v509
    %v511 = vpop.xlane.xlu0 %510
    %v512 = vsel %vm466, %v465, 0.0
    %513 = vadd.xlane.f32.xlu0 %v512
    %v514 = vpop.xlane.xlu0 %513
    %v515 = vsub.f32 %v469, %v372
    %v516 = vsub.f32 %v472, %v377
    %v517 = vsub.f32 %v475, %v382
    %v518 = vsub.f32 %v478, %v387
    %v519 = vsub.f32 %v481, %v392
    %v520 = vsub.f32 %v484, %v397
    %v521 = vsub.f32 %v487, %v402
    %v522 = vsub.f32 %v490, %v407
    %v523 = vsub.f32 %v493, %v412
    %v524 = vsub.f32 %v496, %v417
    %v525 = vsub.f32 %v499, %v422
    %v526 = vsub.f32 %v502, %v427
    %v527 = vsub.f32 %v505, %v432
    %v528 = vsub.f32 %v508, %v437
    %v529 = vsub.f32 %v511, %v442
    %v530 = vsub.f32 %v514, %v447
    %v531 = vmul.f32 %v515, 0.5
    %v532 = vmul.f32 %v516, 0.5
    %v533 = vmul.f32 %v517, 0.5
    %v534 = vmul.f32 %v518, 0.5
    %v535 = vmul.f32 %v519, 0.5
    %v536 = vmul.f32 %v520, 0.5
    %v537 = vmul.f32 %v521, 0.5
    %v538 = vmul.f32 %v522, 0.5
    %v539 = vmul.f32 %v523, 0.5
    %v540 = vmul.f32 %v524, 0.5
    %v541 = vmul.f32 %v525, 0.5
    %v542 = vmul.f32 %v526, 0.5
    %v543 = vmul.f32 %v527, 0.5
    %v544 = vmul.f32 %v528, 0.5
    %v545 = vmul.f32 %v529, 0.5
    %v546 = vmul.f32 %v530, 0.5
    %563 = vrot.lane.b32.xlu0 %v531, 5
    %v564 = vpop.permute.xlu0 %563
    %565 = vrot.lane.b32.xlu0 %v532, 5
    %v566 = vpop.permute.xlu0 %565
    %567 = vrot.lane.b32.xlu0 %v533, 5
    %v568 = vpop.permute.xlu0 %567
    %569 = vrot.lane.b32.xlu0 %v534, 5
    %v570 = vpop.permute.xlu0 %569
    %571 = vrot.lane.b32.xlu0 %v535, 5
    %v572 = vpop.permute.xlu0 %571
    %573 = vrot.lane.b32.xlu0 %v536, 5
    %v574 = vpop.permute.xlu0 %573
    %575 = vrot.lane.b32.xlu0 %v537, 5
    %v576 = vpop.permute.xlu0 %575
    %577 = vrot.lane.b32.xlu0 %v538, 5
    %v578 = vpop.permute.xlu0 %577
    %579 = vrot.lane.b32.xlu0 %v539, 5
    %v580 = vpop.permute.xlu0 %579
    %581 = vrot.lane.b32.xlu0 %v540, 5
    %v582 = vpop.permute.xlu0 %581
    %583 = vrot.lane.b32.xlu0 %v541, 5
    %v584 = vpop.permute.xlu0 %583
    %585 = vrot.lane.b32.xlu0 %v542, 5
    %v586 = vpop.permute.xlu0 %585
    %587 = vrot.lane.b32.xlu0 %v543, 5
    %v588 = vpop.permute.xlu0 %587
    %589 = vrot.lane.b32.xlu0 %v544, 5
    %v590 = vpop.permute.xlu0 %589
    %591 = vrot.lane.b32.xlu0 %v545, 5
    %v592 = vpop.permute.xlu0 %591
    %593 = vrot.lane.b32.xlu0 %v546, 5
    %v594 = vpop.permute.xlu0 %593
    %v611 = vadd.f32 %v160, %v564
    %v612 = vadd.f32 %v165, %v566
    %v613 = vadd.f32 %v170, %v568
    %v614 = vadd.f32 %v175, %v570
    %v615 = vadd.f32 %v180, %v572
    %v616 = vadd.f32 %v185, %v574
    %v617 = vadd.f32 %v190, %v576
    %v618 = vadd.f32 %v195, %v578
    %v619 = vadd.f32 %v200, %v580
    %v620 = vadd.f32 %v205, %v582
    %v621 = vadd.f32 %v210, %v584
    %v622 = vadd.f32 %v215, %v586
    %v623 = vadd.f32 %v220, %v588
    %v624 = vadd.f32 %v225, %v590
    %v625 = vadd.f32 %v230, %v592
    %v626 = vadd.f32 %v235, %v594
    %v627 = vstv %s39
    %v628 = vadd.f32 %v611, %v627
    %v629 = vadd.f32 %v612, %v627
    %v630 = vadd.f32 %v613, %v627
    %v631 = vadd.f32 %v614, %v627
    %v632 = vadd.f32 %v615, %v627
    %v633 = vadd.f32 %v616, %v627
    %v634 = vadd.f32 %v617, %v627
    %v635 = vadd.f32 %v618, %v627
    %v636 = vadd.f32 %v619, %v627
    %v637 = vadd.f32 %v620, %v627
    %v638 = vadd.f32 %v621, %v627
    %v639 = vadd.f32 %v622, %v627
    %v640 = vadd.f32 %v623, %v627
    %v641 = vadd.f32 %v624, %v627
    %v642 = vadd.f32 %v625, %v627
    %v643 = vadd.f32 %v626, %v627
    %v644 = vxor.u32 %v628, 2147483648
    %v645 = vxor.u32 %v629, 2147483648
    %v646 = vxor.u32 %v630, 2147483648
    %v647 = vxor.u32 %v631, 2147483648
    %v648 = vxor.u32 %v632, 2147483648
    %v649 = vxor.u32 %v633, 2147483648
    %v650 = vxor.u32 %v634, 2147483648
    %v651 = vxor.u32 %v635, 2147483648
    %v652 = vxor.u32 %v636, 2147483648
    %v653 = vxor.u32 %v637, 2147483648
    %v654 = vxor.u32 %v638, 2147483648
    %v655 = vxor.u32 %v639, 2147483648
    %v656 = vxor.u32 %v640, 2147483648
    %v657 = vxor.u32 %v641, 2147483648
    %v658 = vxor.u32 %v642, 2147483648
    %v659 = vxor.u32 %v643, 2147483648
    %v660 = vmul.f32 %v644, 1.442695
    %v661 = vpow.pop %v660
    %v662 = vmul.f32 %v645, 1.442695
    %v663 = vpow.pop %v662
    %v664 = vmul.f32 %v646, 1.442695
    %v665 = vpow.pop %v664
    %v666 = vmul.f32 %v647, 1.442695
    %v667 = vpow.pop %v666
    %v668 = vmul.f32 %v648, 1.442695
    %v669 = vpow.pop %v668
    %v670 = vmul.f32 %v649, 1.442695
    %v671 = vpow.pop %v670
    %v672 = vmul.f32 %v650, 1.442695
    %v673 = vpow.pop %v672
    %v674 = vmul.f32 %v651, 1.442695
    %v675 = vpow.pop %v674
    %v676 = vmul.f32 %v652, 1.442695
    %v677 = vpow.pop %v676
    %v678 = vmul.f32 %v653, 1.442695
    %v679 = vpow.pop %v678
    %v680 = vmul.f32 %v654, 1.442695
    %v681 = vpow.pop %v680
    %v682 = vmul.f32 %v655, 1.442695
    %v683 = vpow.pop %v682
    %v684 = vmul.f32 %v656, 1.442695
    %v685 = vpow.pop %v684
    %v686 = vmul.f32 %v657, 1.442695
    %v687 = vpow.pop %v686
    %v688 = vmul.f32 %v658, 1.442695
    %v689 = vpow.pop %v688
    %v690 = vmul.f32 %v659, 1.442695
    %v691 = vpow.pop %v690
    %v692 = vadd.f32 %v661, 1.0
    %v693 = vadd.f32 %v663, 1.0
    %v694 = vadd.f32 %v665, 1.0
    %v695 = vadd.f32 %v667, 1.0
    %v696 = vadd.f32 %v669, 1.0
    %v697 = vadd.f32 %v671, 1.0
    %v698 = vadd.f32 %v673, 1.0
    %v699 = vadd.f32 %v675, 1.0
    %v700 = vadd.f32 %v677, 1.0
    %v701 = vadd.f32 %v679, 1.0
    %v702 = vadd.f32 %v681, 1.0
    %v703 = vadd.f32 %v683, 1.0
    %v704 = vadd.f32 %v685, 1.0
    %v705 = vadd.f32 %v687, 1.0
    %v706 = vadd.f32 %v689, 1.0
    %v707 = vadd.f32 %v691, 1.0
    %v708 = vrcp.pop %v692
    %v709 = vmul.f32 1.0, %v708
    %v710 = vrcp.pop %v693
    %v711 = vmul.f32 1.0, %v710
    %v712 = vrcp.pop %v694
    %v713 = vmul.f32 1.0, %v712
    %v714 = vrcp.pop %v695
    %v715 = vmul.f32 1.0, %v714
    %v716 = vrcp.pop %v696
    %v717 = vmul.f32 1.0, %v716
    %v718 = vrcp.pop %v697
    %v719 = vmul.f32 1.0, %v718
    %v720 = vrcp.pop %v698
    %v721 = vmul.f32 1.0, %v720
    %v722 = vrcp.pop %v699
    %v723 = vmul.f32 1.0, %v722
    %v724 = vrcp.pop %v700
    %v725 = vmul.f32 1.0, %v724
    %v726 = vrcp.pop %v701
    %v727 = vmul.f32 1.0, %v726
    %v728 = vrcp.pop %v702
    %v729 = vmul.f32 1.0, %v728
    %v730 = vrcp.pop %v703
    %v731 = vmul.f32 1.0, %v730
    %v732 = vrcp.pop %v704
    %v733 = vmul.f32 1.0, %v732
    %v734 = vrcp.pop %v705
    %v735 = vmul.f32 1.0, %v734
    %v736 = vrcp.pop %v706
    %v737 = vmul.f32 1.0, %v736
    %v738 = vrcp.pop %v707
    %v739 = vmul.f32 1.0, %v738
    %756 = vrot.lane.b32.xlu0 %v709, 123
    %v757 = vpop.permute.xlu0 %756
    %758 = vrot.lane.b32.xlu0 %v711, 123
    %v759 = vpop.permute.xlu0 %758
    %760 = vrot.lane.b32.xlu0 %v713, 123
    %v761 = vpop.permute.xlu0 %760
    %762 = vrot.lane.b32.xlu0 %v715, 123
    %v763 = vpop.permute.xlu0 %762
    %764 = vrot.lane.b32.xlu0 %v717, 123
    %v765 = vpop.permute.xlu0 %764
    %766 = vrot.lane.b32.xlu0 %v719, 123
    %v767 = vpop.permute.xlu0 %766
    %768 = vrot.lane.b32.xlu0 %v721, 123
    %v769 = vpop.permute.xlu0 %768
    %770 = vrot.lane.b32.xlu0 %v723, 123
    %v771 = vpop.permute.xlu0 %770
    %772 = vrot.lane.b32.xlu0 %v725, 123
    %v773 = vpop.permute.xlu0 %772
    %774 = vrot.lane.b32.xlu0 %v727, 123
    %v775 = vpop.permute.xlu0 %774
    %776 = vrot.lane.b32.xlu0 %v729, 123
    %v777 = vpop.permute.xlu0 %776
    %778 = vrot.lane.b32.xlu0 %v731, 123
    %v779 = vpop.permute.xlu0 %778
    %780 = vrot.lane.b32.xlu0 %v733, 123
    %v781 = vpop.permute.xlu0 %780
    %782 = vrot.lane.b32.xlu0 %v735, 123
    %v783 = vpop.permute.xlu0 %782
    %784 = vrot.lane.b32.xlu0 %v737, 123
    %v785 = vpop.permute.xlu0 %784
    %786 = vrot.lane.b32.xlu0 %v739, 123
    %v787 = vpop.permute.xlu0 %786
    %804 = vxpose.xlu0.b32.start [1/16] %v757, 128
    %805 = vxpose.xlu0.b32.cont [2/16] %v759, 128
    %806 = vxpose.xlu0.b32.cont [3/16] %v761, 128
    %807 = vxpose.xlu0.b32.cont [4/16] %v763, 128
    %808 = vxpose.xlu0.b32.cont [5/16] %v765, 128
    %809 = vxpose.xlu0.b32.cont [6/16] %v767, 128
    %810 = vxpose.xlu0.b32.cont [7/16] %v769, 128
    %811 = vxpose.xlu0.b32.cont [8/16] %v771, 128
    %812 = vxpose.xlu0.b32.cont [9/16] %v773, 128
    %813 = vxpose.xlu0.b32.cont [10/16] %v775, 128
    %814 = vxpose.xlu0.b32.cont [11/16] %v777, 128
    %815 = vxpose.xlu0.b32.cont [12/16] %v779, 128
    %816 = vxpose.xlu0.b32.cont [13/16] %v781, 128
    %817 = vxpose.xlu0.b32.cont [14/16] %v783, 128
    %818 = vxpose.xlu0.b32.cont [15/16] %v785, 128
    %819 = vxpose.xlu0.b32.end [16/16] %v787, 128
    %v820 = vpop.trf.xlu0
    %v821 = vpop.trf.xlu0
    %v822 = vpop.trf.xlu0
    %v823 = vpop.trf.xlu0
    %v824 = vpop.trf.xlu0
    %v825 = vpop.trf.xlu0
    %v826 = vpop.trf.xlu0
    %v827 = vpop.trf.xlu0
    %v828 = vpop.trf.xlu0
    %v829 = vpop.trf.xlu0
    %v830 = vpop.trf.xlu0
    %v831 = vpop.trf.xlu0
    %v832 = vpop.trf.xlu0
    %v833 = vpop.trf.xlu0
    %v834 = vpop.trf.xlu0
    %v835 = vpop.trf.xlu0
    %836 = vst [vmem:[#allocation3] sm:$0x1] %v820
    // Predicated region
    $region18: #{tpu_custom_call.1} parent=1 // pred_check
      _
    $region19: #{tpu_custom_call.1} parent=1 // pred_check_branch
      %838 = sbr.rel (0) target = $region21
    $region20: #{tpu_custom_call.1} parent=1 // pred_region
      %s840 = ssub.s32 16, 16
      %841 = vsyncadd [#allocation4], %s840
      %s843 = sshll.u32 [#allocation3], 4
      %s844 = int_to_ptr.vmem [resolvable:$true] %s843
      %846 = dma.vmem_to_hbm [thread:$0]  %s844, 16, %s4, [#allocation4]
    $region21: #{tpu_custom_call.1} parent=1 // pred_fallthru
      _
    // Predicated region
    $region22: #{tpu_custom_call.1} parent=1 // pred_check
      _
    $region23: #{tpu_custom_call.1} parent=1 // pred_check_branch
      %848 = sbr.rel (0) target = $region25
    $region24: #{tpu_custom_call.1} parent=1 // pred_region
      %849 = dma.done [#allocation4], 16
    $region25: #{tpu_custom_call.1} parent=1 // pred_fallthru
      _
    %850 = vsyncpa [#allocation4], 1

</llo_original>
